<compile_context>
chip_gen: v5e
topology: v5e:2x2
jax: 0.10.0
libtpu: 0.0.40
codegen_flags: <defaults>
</compile_context>

<pallas_src>
import functools

import jax
import jax.numpy as jnp
from jax.experimental import pallas as pl
from jax.experimental.pallas import tpu as pltpu


def _round_up(x, m):
    return (x + m - 1) // m * m


def _cdiv(a, b):
    return (a + b - 1) // b


@functools.lru_cache(maxsize=1)
def _vmem_capacity_bytes():
    """Physical per-TensorCore VMEM; conservative 64 MiB (v7x) fallback."""
    try:
        cap = int(pltpu.get_tpu_info().vmem_capacity_bytes)
        if cap > 0:
            return cap
    except Exception:
        pass
    return 64 * 1024 * 1024


def _pick_tn(c_p, budget, itemsize):
    """Largest N tile (multiple of 128 dividing c_p) whose double-buffered W2 tile is cheap."""
    for tn in (2048, 1024, 512, 256, 128):
        if c_p % tn == 0 and 2 * c_p * tn * itemsize <= budget // 4:
            return tn
    return 128


# --------------------------------------------------------------------------------------
# Kernels
# --------------------------------------------------------------------------------------

def _mlp_kernel_resident(x_ref, w1_ref, b1_ref, w2_ref, b2_ref, o_ref):
    """Both weight matrices VMEM-resident; grid over batch tiles only."""
    h = jnp.dot(x_ref[...], w1_ref[...], preferred_element_type=jnp.float32)
    h = jnp.maximum(h + b1_ref[...], 0.0)
    # Dropout(0.1) -> identity (eval semantics)
    y = jnp.dot(h.astype(w2_ref.dtype), w2_ref[...],
                preferred_element_type=jnp.float32)
    y = jnp.maximum(y + b2_ref[...], 0.0)
    # Dropout(0.1) -> identity (eval semantics)
    o_ref[...] = y.astype(o_ref.dtype)


def _mlp_kernel_ntiled(x_ref, w1_ref, b1_ref, w2_ref, b2_ref, o_ref, h_ref):
    """W2 tiled over output columns; layer-1 activation cached in VMEM scratch."""
    @pl.when(pl.program_id(1) == 0)
    def _():
        h = jnp.dot(x_ref[...], w1_ref[...], preferred_element_type=jnp.float32)
        h = jnp.maximum(h + b1_ref[...], 0.0)
        # Dropout(0.1) -> identity (eval semantics)
        h_ref[...] = h.astype(h_ref.dtype)

    y = jnp.dot(h_ref[...], w2_ref[...], preferred_element_type=jnp.float32)
    y = jnp.maximum(y + b2_ref[...], 0.0)
    # Dropout(0.1) -> identity (eval semantics)
    o_ref[...] = y.astype(o_ref.dtype)


# --------------------------------------------------------------------------------------
# Host-side wrappers
# --------------------------------------------------------------------------------------

def prepare_params(w1, b1, w2, b2, *, compute_dtype=jnp.bfloat16):
    """One-time pad + cast of the weights (hoist this out of the per-forward path).

    Weights are (in, out), i.e. transposed vs torch nn.Linear.weight.
    Biases accepted as (out,) or (1, out).
    """
    in_f, common = w1.shape
    in_p = _round_up(in_f, 128)
    c_p = _round_up(common, 128)
    cdt = jnp.dtype(compute_dtype)

    b1 = jnp.reshape(b1, (1, -1))
    b2 = jnp.reshape(b2, (1, -1))

    # Zero padding keeps the math exact: padded x columns hit zero weight rows, padded
    # hidden/output columns get zero weights + zero bias -> ReLU(0) = 0.
    w1p = jnp.pad(w1, ((0, in_p - in_f), (0, c_p - common))).astype(cdt)
    w2p = jnp.pad(w2, ((0, c_p - common), (0, c_p - common))).astype(cdt)
    b1p = jnp.pad(b1, ((0, 0), (0, c_p - common))).astype(jnp.float32)
    b2p = jnp.pad(b2, ((0, 0), (0, c_p - common))).astype(jnp.float32)

    return dict(w1=w1p, b1=b1p, w2=w2p, b2=b2p,
                in_f=in_f, common=common, in_p=in_p, c_p=c_p,
                compute_dtype=cdt)


def mlp_forward_prepared(x, params, *, tm=512, out_dtype=None, tn=None,
                         _force_ntiled=False):
    """y = relu(relu(x @ w1 + b1) @ w2 + b2) with pre-padded/cast params."""
    B, in_f = x.shape
    assert in_f == params["in_f"], "input feature mismatch vs prepared params"
    common, in_p, c_p = params["common"], params["in_p"], params["c_p"]
    cdt = params["compute_dtype"]
    out_dt = jnp.dtype(out_dtype) if out_dtype is not None else jnp.dtype(x.dtype)

    w1p, b1p, w2p, b2p = params["w1"], params["b1"], params["w2"], params["b2"]

    # --- batch tiling: multiple of 16; cap so the grid has >= 2 batch steps when
    #     possible (lets "parallel" shard across v7x's 2 TensorCores). ---
    b16 = _round_up(B, 16)
    tm = max(16, min(_round_up(tm, 16), b16))
    if b16 > 16:
        tm = min(tm, _round_up(_cdiv(b16, 2), 16))
    B_p = _round_up(b16, tm)

    # --- pad + cast x; fast path when already aligned / right dtype ---
    xp = x
    if (B_p, in_p) != (B, in_f):
        xp = jnp.pad(xp, ((0, B_p - B), (0, in_p - in_f)))
    if xp.dtype != cdt:
        xp = xp.astype(cdt)

    # --- VMEM budget clamped to the actual chip ---
    vmem_cap = _vmem_capacity_bytes()
    budget = int(0.9 * vmem_cap)

    w_bytes = (w1p.size + w2p.size) * cdt.itemsize + (b1p.size + b2p.size) * 4
    x_tile = tm * in_p * cdt.itemsize
    out_tile_full = tm * c_p * out_dt.itemsize
    h_tmp = tm * c_p * 4  # f32 layer-1 temp inside the kernel
    resident_need = w_bytes + 2 * x_tile + 2 * out_tile_full + h_tmp

    use_resident = (not _force_ntiled
                    and w_bytes <= budget // 2
                    and resident_need <= budget)

    # Scheduler hint (rough; both paths).
    flops = 2 * B_p * in_p * c_p + 2 * B_p * c_p * c_p
    bytes_accessed = (xp.size * xp.dtype.itemsize
                      + w1p.size * cdt.itemsize + w2p.size * cdt.itemsize
                      + (b1p.size + b2p.size) * 4
                      + B_p * c_p * out_dt.itemsize)
    cost = pl.CostEstimate(flops=flops, transcendentals=0,
                           bytes_accessed=bytes_accessed)

    if use_resident:
        grid = (B_p // tm,)
        vmem_limit = max(16 << 20, min(budget, resident_need + (4 << 20)))
        out_p = pl.pallas_call(
            _mlp_kernel_resident,
            out_shape=jax.ShapeDtypeStruct((B_p, c_p), out_dt),
            grid_spec=pltpu.PrefetchScalarGridSpec(
                num_scalar_prefetch=0,
                grid=grid,
                in_specs=[
                    # x: pipelined (double-buffered) batch tiles.
                    pl.BlockSpec((tm, in_p), lambda i: (i, 0)),
                    # Weights / biases: whole-array VMEM residents (single copy).
                    pl.BlockSpec(memory_space=pltpu.MemorySpace.VMEM),  # W1
                    pl.BlockSpec(memory_space=pltpu.MemorySpace.VMEM),  # b1
                    pl.BlockSpec(memory_space=pltpu.MemorySpace.VMEM),  # W2
                    pl.BlockSpec(memory_space=pltpu.MemorySpace.VMEM),  # b2
                ],
                out_specs=pl.BlockSpec((tm, c_p), lambda i: (i, 0)),
            ),
            compiler_params=pltpu.CompilerParams(
                dimension_semantics=("parallel",),
                vmem_limit_bytes=vmem_limit,
                allow_input_fusion=[True, False, False, False, False],
            ),
            cost_estimate=cost,
        )(xp, w1p, b1p, w2p, b2p)
    else:
        # Fallback: tile W2 / b2 / output over the N (output-feature) axis; keep W1 + b1
        # resident and cache the layer-1 activation in a VMEM scratch across N tiles.
        if tn is None:
            tn = _pick_tn(c_p, budget, cdt.itemsize)
        assert tn % 128 == 0 and c_p % tn == 0, "tn must be a 128-multiple dividing c_p"
        grid = (B_p // tm, c_p // tn)

        need = ((w1p.size * cdt.itemsize + b1p.size * 4)   # resident W1 + b1
                + 2 * x_tile                                # double-buffered x tiles
                + 2 * c_p * tn * cdt.itemsize + 2 * tn * 4  # W2 / b2 tiles
                + 2 * tm * tn * out_dt.itemsize             # output tiles
                + tm * c_p * cdt.itemsize                   # h scratch
                + h_tmp)                                    # f32 layer-1 temp
        vmem_limit = max(16 << 20, min(budget, need + (4 << 20)))

        out_p = pl.pallas_call(
            _mlp_kernel_ntiled,
            out_shape=jax.ShapeDtypeStruct((B_p, c_p), out_dt),
            grid_spec=pltpu.PrefetchScalarGridSpec(
                num_scalar_prefetch=0,
                grid=grid,
                in_specs=[
                    pl.BlockSpec((tm, in_p), lambda i, j: (i, 0)),       # x tile
                    pl.BlockSpec(memory_space=pltpu.MemorySpace.VMEM),   # W1 resident
                    pl.BlockSpec(memory_space=pltpu.MemorySpace.VMEM),   # b1 resident
                    pl.BlockSpec((c_p, tn), lambda i, j: (0, j)),        # W2 tile
                    pl.BlockSpec((1, tn), lambda i, j: (0, j)),          # b2 tile
                ],
                out_specs=pl.BlockSpec((tm, tn), lambda i, j: (i, j)),
                scratch_shapes=[pltpu.VMEM((tm, c_p), cdt)],             # h cache
            ),
            compiler_params=pltpu.CompilerParams(
                dimension_semantics=("parallel", "arbitrary"),
                vmem_limit_bytes=vmem_limit,
                allow_input_fusion=[True, False, False, False, False],
            ),
            cost_estimate=cost,
        )(xp, w1p, b1p, w2p, b2p)

    if (B_p, c_p) == (B, common):
        return out_p
    return out_p[:B, :common]


def mlp_forward(x, w1, b1, w2, b2, *, tm=512, compute_dtype=jnp.bfloat16,
                out_dtype=None):
    """Convenience wrapper (pads/casts weights per call; prefer prepare_params + _prepared)."""
    params = prepare_params(w1, b1, w2, b2, compute_dtype=compute_dtype)
    return mlp_forward_prepared(x, params, tm=tm, out_dtype=out_dtype)


# --------------------------------------------------------------------------------------
# Reference / test harness
# --------------------------------------------------------------------------------------

def init_params(key, input_size, common_size, dtype=jnp.float32):
    """Deterministic init mimicking torch.nn.Linear default (U(-1/sqrt(in), 1/sqrt(in)))."""
    k1, k2, k3, k4 = jax.random.split(key, 4)
    bound1 = 1.0 / jnp.sqrt(input_size)
    bound2 = 1.0 / jnp.sqrt(common_size)
    w1 = jax.random.uniform(k1, (input_size, common_size), dtype, -bound1, bound1)
    b1 = jax.random.uniform(k2, (common_size,), dtype, -bound1, bound1)
    w2 = jax.random.uniform(k3, (common_size, common_size), dtype, -bound2, bound2)
    b2 = jax.random.uniform(k4, (common_size,), dtype, -bound2, bound2)
    return w1, b1, w2, b2


def mlp_reference(x, w1, b1, w2, b2):
    h = jnp.maximum(x @ w1 + b1[None, :], 0.0)
    return jnp.maximum(h @ w2 + b2[None, :], 0.0)


if __name__ == "__main__":
    key = jax.random.PRNGKey(0)
    kx, kp, kx2, kp2, kx3, kp3 = jax.random.split(key, 6)

    # ---- Case 1: module-default-ish small shapes, exact f32 path (resident kernel) ----
    input_size, common_size, batch = 32, 32, 8
    x = jax.random.normal(kx, (batch, input_size), jnp.float32)
    w1, b1, w2, b2 = init_params(kp, input_size, common_size)

    params_f32 = prepare_params(w1, b1, w2, b2, compute_dtype=jnp.float32)
    out_f32 = jax.block_until_ready(mlp_forward_prepared(x, params_f32))
    ref = mlp_reference(x, w1, b1, w2, b2)
    assert out_f32.shape == (batch, common_size)
    assert jnp.allclose(out_f32, ref, atol=1e-5, rtol=1e-5), "f32 mismatch vs reference"

    # bf16 MXU path (f32 accumulation), bf16 output flag, same problem.
    params_bf16 = prepare_params(w1, b1, w2, b2, compute_dtype=jnp.bfloat16)
    out_bf16 = jax.block_until_ready(
        mlp_forward_prepared(x, params_bf16, out_dtype=jnp.bfloat16))
    assert out_bf16.dtype == jnp.bfloat16
    assert jnp.allclose(out_bf16.astype(jnp.float32), ref, atol=5e-2, rtol=5e-2), \
        "bf16 mismatch vs reference"

    # ---- Case 2: non-aligned shapes (padding + multi-step batch grid) ----
    input_size2, common_size2, batch2 = 96, 160, 40
    x2 = jax.random.normal(kx2, (batch2, input_size2), jnp.float32)
    w1b, b1b, w2b, b2b = init_params(kp2, input_size2, common_size2)
    params2 = prepare_params(w1b, b1b, w2b, b2b, compute_dtype=jnp.float32)
    out2 = jax.block_until_ready(mlp_forward_prepared(x2, params2, tm=16))
    ref2 = mlp_reference(x2, w1b, b1b, w2b, b2b)
    assert out2.shape == (batch2, common_size2)
    assert jnp.allclose(out2, ref2, atol=1e-4, rtol=1e-4), "padded-case mismatch vs reference"

    # ---- Case 3: force the N-tiled fallback path (large-`common` / v7x VMEM guard) ----
    input_size3, common_size3, batch3 = 64, 256, 32
    x3 = jax.random.normal(kx3, (batch3, input_size3), jnp.float32)
    w1c, b1c, w2c, b2c = init_params(kp3, input_size3, common_size3)
    params3 = prepare_params(w1c, b1c, w2c, b2c, compute_dtype=jnp.float32)
    out3 = jax.block_until_ready(
        mlp_forward_prepared(x3, params3, tm=16, tn=128, _force_ntiled=True))
    ref3 = mlp_reference(x3, w1c, b1c, w2c, b2c)
    assert out3.shape == (batch3, common_size3)
    assert jnp.allclose(out3, ref3, atol=1e-4, rtol=1e-4), "ntiled-case mismatch vs reference"

    print("KERNEL_OK")
</pallas_src>

<mosaic_0001>
module attributes {stable_mosaic.version = 11 : i64} {
  func.func @_mlp_kernel_resident(%arg0: i32, %arg1: memref<16x128xf32, #tpu.memory_space<vmem>>, %arg2: memref<128x128xf32, #tpu.memory_space<vmem>>, %arg3: memref<1x128xf32, #tpu.memory_space<vmem>>, %arg4: memref<128x128xf32, #tpu.memory_space<vmem>>, %arg5: memref<1x128xf32, #tpu.memory_space<vmem>>, %arg6: memref<16x128xf32, #tpu.memory_space<vmem>>) attributes {dimension_semantics = [#tpu.dimension_semantics<parallel>], iteration_bounds = array<i64: 1>, scalar_prefetch = 0 : i64, scratch_operands = 0 : i64, tpu.core_type = #tpu.core_type<tc>, window_params = [{transform_indices = @transform_0, window_bounds = array<i64: 16, 128>}, {pipeline_mode = #tpu.pipeline_mode<synchronous>, transform_indices = @transform_1, window_bounds = array<i64: 128, 128>}, {pipeline_mode = #tpu.pipeline_mode<synchronous>, transform_indices = @transform_2, window_bounds = array<i64: 1, 128>}, {pipeline_mode = #tpu.pipeline_mode<synchronous>, transform_indices = @transform_3, window_bounds = array<i64: 128, 128>}, {pipeline_mode = #tpu.pipeline_mode<synchronous>, transform_indices = @transform_4, window_bounds = array<i64: 1, 128>}, {transform_indices = @transform_5, window_bounds = array<i64: 16, 128>}]} {
    %c0 = arith.constant 0 : index
    %c0_0 = arith.constant 0 : index
    %0 = vector.load %arg1[%c0, %c0_0] : memref<16x128xf32, #tpu.memory_space<vmem>>, vector<16x128xf32>
    %c0_1 = arith.constant 0 : index
    %c0_2 = arith.constant 0 : index
    %1 = vector.load %arg2[%c0_1, %c0_2] : memref<128x128xf32, #tpu.memory_space<vmem>>, vector<128x128xf32>
    %cst = arith.constant dense<0.000000e+00> : vector<16x128xf32>
    %2 = tpu.matmul %0, %1, %cst {dimension_numbers = #tpu.dot_dimension_numbers<[1], [0], [0], [1], [0, 0, 1, 1], [], []>} : vector<16x128xf32>, vector<128x128xf32>, vector<16x128xf32> -> vector<16x128xf32>
    %c0_3 = arith.constant 0 : index
    %c0_4 = arith.constant 0 : index
    %3 = vector.load %arg3[%c0_3, %c0_4] : memref<1x128xf32, #tpu.memory_space<vmem>>, vector<1x128xf32>
    %4 = vector.broadcast %3 : vector<1x128xf32> to vector<16x128xf32>
    %5 = arith.addf %2, %4 : vector<16x128xf32>
    %cst_5 = arith.constant 0.000000e+00 : f32
    %6 = vector.broadcast %cst_5 : f32 to vector<16x128xf32>
    %7 = arith.maximumf %5, %6 : vector<16x128xf32>
    %c0_6 = arith.constant 0 : index
    %c0_7 = arith.constant 0 : index
    %8 = vector.load %arg4[%c0_6, %c0_7] : memref<128x128xf32, #tpu.memory_space<vmem>>, vector<128x128xf32>
    %cst_8 = arith.constant dense<0.000000e+00> : vector<16x128xf32>
    %9 = tpu.matmul %7, %8, %cst_8 {dimension_numbers = #tpu.dot_dimension_numbers<[1], [0], [0], [1], [0, 0, 1, 1], [], []>} : vector<16x128xf32>, vector<128x128xf32>, vector<16x128xf32> -> vector<16x128xf32>
    %c0_9 = arith.constant 0 : index
    %c0_10 = arith.constant 0 : index
    %10 = vector.load %arg5[%c0_9, %c0_10] : memref<1x128xf32, #tpu.memory_space<vmem>>, vector<1x128xf32>
    %11 = vector.broadcast %10 : vector<1x128xf32> to vector<16x128xf32>
    %12 = arith.addf %9, %11 : vector<16x128xf32>
    %cst_11 = arith.constant 0.000000e+00 : f32
    %13 = vector.broadcast %cst_11 : f32 to vector<16x128xf32>
    %14 = arith.maximumf %12, %13 : vector<16x128xf32>
    %c0_12 = arith.constant 0 : index
    %c0_13 = arith.constant 0 : index
    %15 = vector.load %arg6[%c0_12, %c0_13] : memref<16x128xf32, #tpu.memory_space<vmem>>, vector<16x128xf32>
    tpu.vector_store %arg6[%c0_12, %c0_13], %14 {strides = array<i32>} : memref<16x128xf32, #tpu.memory_space<vmem>>, vector<16x128xf32>,
    return
  }
  func.func @transform_0(%arg0: i32) -> (i32, i32) {
    %c0_i32 = arith.constant 0 : i32
    %c0_i32_0 = arith.constant 0 : i32
    return %arg0, %c0_i32 : i32, i32
  }
  func.func @transform_1(%arg0: i32) -> (i32, i32) {
    %c0_i32 = arith.constant 0 : i32
    %c0_i32_0 = arith.constant 0 : i32
    %c0_i32_1 = arith.constant 0 : i32
    return %c0_i32, %c0_i32_0 : i32, i32
  }
  func.func @transform_2(%arg0: i32) -> (i32, i32) {
    %c0_i32 = arith.constant 0 : i32
    %c0_i32_0 = arith.constant 0 : i32
    %c0_i32_1 = arith.constant 0 : i32
    return %c0_i32, %c0_i32_0 : i32, i32
  }
  func.func @transform_3(%arg0: i32) -> (i32, i32) {
    %c0_i32 = arith.constant 0 : i32
    %c0_i32_0 = arith.constant 0 : i32
    %c0_i32_1 = arith.constant 0 : i32
    return %c0_i32, %c0_i32_0 : i32, i32
  }
  func.func @transform_4(%arg0: i32) -> (i32, i32) {
    %c0_i32 = arith.constant 0 : i32
    %c0_i32_0 = arith.constant 0 : i32
    %c0_i32_1 = arith.constant 0 : i32
    return %c0_i32, %c0_i32_0 : i32, i32
  }
  func.func @transform_5(%arg0: i32) -> (i32, i32) {
    %c0_i32 = arith.constant 0 : i32
    %c0_i32_0 = arith.constant 0 : i32
    return %arg0, %c0_i32 : i32, i32
  }
}

</mosaic_0001>

<llo_original>
// kernel: tpu_custom_call.1
$region0: #{tpu_custom_call.1}
  #allocation0 [shape = 'u32[]', space=smem, size = 0x4, offset = 0x4, fixed_abs, tag = 'smem constant byte address 0x4 - core index']
  #allocation1 [shape = 'u32[72,128]{1,0:T(1,128)}', space=vmem, size = 0x9000, scoped, tag = 'internal scratch']
  %s0 = inlined_call_operand.hbm [shape: f32[16,128], index: 0, kind: input, shape index: {}]
  %s1 = inlined_call_operand.hbm [shape: f32[128,128], index: 1, kind: input, shape index: {}]
  %s2 = inlined_call_operand.vmem [shape: f32[1,128], index: 2, kind: input, shape index: {}]
  %s3 = inlined_call_operand.hbm [shape: f32[128,128], index: 3, kind: input, shape index: {}]
  %s4 = inlined_call_operand.vmem [shape: f32[1,128], index: 4, kind: input, shape index: {}]
  %s5 = inlined_call_operand.hbm [shape: f32[16,128], index: 5, kind: output, shape index: {}]
  %s6 = sld [smem:[#allocation0]]
  $region42: #{tpu_custom_call.1} parent=0
    _
  %s8 = ssub.s32 1, %s6
  %s9 = scalar_select 0, %s8, %s6
  $region1: #{tpu_custom_call.1} parent=0
    #allocation2 [shape = 'u8[8192]{0}', space=vmem, size = 0x2000, scoped, tag = 'input window, operand 0, single buffered']
    #allocation3 [shape = 's32[1]{0}', space=sflag, size = 0x4, scoped, tag = 'scoped memory for tpu_custom_call.1']
    #allocation4 [shape = 's32[1]{0}', space=sflag, size = 0x4, scoped, tag = 'scoped memory for tpu_custom_call.1']
    #allocation5 [shape = 'u8[65536]{0}', space=vmem, size = 0x10000, scoped, tag = 'input window, operand 1, single buffered']
    #allocation6 [shape = 's32[1]{0}', space=sflag, size = 0x4, scoped, tag = 'scoped memory for tpu_custom_call.1']
    #allocation7 [shape = 'u8[65536]{0}', space=vmem, size = 0x10000, scoped, tag = 'input window, operand 3, single buffered']
    #allocation8 [shape = 'u8[8192]{0}', space=vmem, size = 0x2000, scoped, tag = 'output window, operand 0, single buffered']
    %10 = vsyncpa [#allocation3], 0
    %11 = vsyncpa [#allocation6], 0
    %12 = vsyncpa [#allocation4], 0
    // Predicated region
    $region2: #{tpu_custom_call.1} parent=1 // pred_check
      _
    $region3: #{tpu_custom_call.1} parent=1 // pred_check_branch
      %14 = sbr.rel (0) target = $region5
    $region4: #{tpu_custom_call.1} parent=1 // pred_region
      %16 = vsyncadd [#allocation3], 0
      %s17 = sshll.u32 %s0, 4
      %s18 = int_to_ptr.hbm [resolvable:$true] %s17
      %s19 = sshll.u32 [#allocation2], 4
      %s20 = int_to_ptr.vmem [resolvable:$true] %s19
      %25 = dma.hbm_to_vmem [thread:$0]  %s18, 256, %s20, [#allocation3], 128, 128, 8
    $region5: #{tpu_custom_call.1} parent=1 // pred_fallthru
      _
    // Predicated region
    $region6: #{tpu_custom_call.1} parent=1 // pred_check
      _
    $region7: #{tpu_custom_call.1} parent=1 // pred_check_branch
      %27 = sbr.rel (0) target = $region9
    $region8: #{tpu_custom_call.1} parent=1 // pred_region
      %29 = vsyncadd [#allocation6], 0
      %s30 = sshll.u32 %s1, 4
      %s31 = int_to_ptr.hbm [resolvable:$true] %s30
      %s32 = sshll.u32 [#allocation5], 4
      %s33 = int_to_ptr.vmem [resolvable:$true] %s32
      %38 = dma.hbm_to_vmem [thread:$0]  %s31, 2048, %s33, [#allocation6], 128, 128, 8
    $region9: #{tpu_custom_call.1} parent=1 // pred_fallthru
      _
    // Predicated region
    $region10: #{tpu_custom_call.1} parent=1 // pred_check
      _
    $region11: #{tpu_custom_call.1} parent=1 // pred_check_branch
      %40 = sbr.rel (0) target = $region13
    $region12: #{tpu_custom_call.1} parent=1 // pred_region
      _
    $region13: #{tpu_custom_call.1} parent=1 // pred_fallthru
      _
    // Predicated region
    $region14: #{tpu_custom_call.1} parent=1 // pred_check
      _
    $region15: #{tpu_custom_call.1} parent=1 // pred_check_branch
      %42 = sbr.rel (0) target = $region17
    $region16: #{tpu_custom_call.1} parent=1 // pred_region
      %44 = vsyncadd [#allocation6], 0
      %s45 = sshll.u32 %s3, 4
      %s46 = int_to_ptr.hbm [resolvable:$true] %s45
      %s47 = sshll.u32 [#allocation7], 4
      %s48 = int_to_ptr.vmem [resolvable:$true] %s47
      %53 = dma.hbm_to_vmem [thread:$0]  %s46, 2048, %s48, [#allocation6], 128, 128, 8
    $region17: #{tpu_custom_call.1} parent=1 // pred_fallthru
      _
    // Predicated region
    $region18: #{tpu_custom_call.1} parent=1 // pred_check
      _
    $region19: #{tpu_custom_call.1} parent=1 // pred_check_branch
      %55 = sbr.rel (0) target = $region21
    $region20: #{tpu_custom_call.1} parent=1 // pred_region
      _
    $region21: #{tpu_custom_call.1} parent=1 // pred_fallthru
      _
    // Predicated region
    $region22: #{tpu_custom_call.1} parent=1 // pred_check
      _
    $region23: #{tpu_custom_call.1} parent=1 // pred_check_branch
      %57 = sbr.rel (0) target = $region25
    $region24: #{tpu_custom_call.1} parent=1 // pred_region
      %59 = dma.done [#allocation3], 256
    $region25: #{tpu_custom_call.1} parent=1 // pred_fallthru
      _
    // Predicated region
    $region26: #{tpu_custom_call.1} parent=1 // pred_check
      _
    $region27: #{tpu_custom_call.1} parent=1 // pred_check_branch
      %61 = sbr.rel (0) target = $region29
    $region28: #{tpu_custom_call.1} parent=1 // pred_region
      %63 = dma.done [#allocation6], 2048
    $region29: #{tpu_custom_call.1} parent=1 // pred_fallthru
      _
    // Predicated region
    $region30: #{tpu_custom_call.1} parent=1 // pred_check
      _
    $region31: #{tpu_custom_call.1} parent=1 // pred_check_branch
      %65 = sbr.rel (0) target = $region33
    $region32: #{tpu_custom_call.1} parent=1 // pred_region
      %67 = dma.done [#allocation6], 2048
    $region33: #{tpu_custom_call.1} parent=1 // pred_fallthru
      _
    %v68 = vld [vmem:[#allocation2] sm:$0xff]
    %v69 = vld [vmem:[#allocation2 + $0x8] sm:$0xff]
    %v70 = vld [vmem:[#allocation5] sm:$0xff]
    %v71 = vld [vmem:[#allocation5 + $0x8] sm:$0xff]
    %v72 = vld [vmem:[#allocation5 + $0x10] sm:$0xff]
    %v73 = vld [vmem:[#allocation5 + $0x18] sm:$0xff]
    %v74 = vld [vmem:[#allocation5 + $0x20] sm:$0xff]
    %v75 = vld [vmem:[#allocation5 + $0x28] sm:$0xff]
    %v76 = vld [vmem:[#allocation5 + $0x30] sm:$0xff]
    %v77 = vld [vmem:[#allocation5 + $0x38] sm:$0xff]
    %v78 = vld [vmem:[#allocation5 + $0x40] sm:$0xff]
    %v79 = vld [vmem:[#allocation5 + $0x48] sm:$0xff]
    %v80 = vld [vmem:[#allocation5 + $0x50] sm:$0xff]
    %v81 = vld [vmem:[#allocation5 + $0x58] sm:$0xff]
    %v82 = vld [vmem:[#allocation5 + $0x60] sm:$0xff]
    %v83 = vld [vmem:[#allocation5 + $0x68] sm:$0xff]
    %v84 = vld [vmem:[#allocation5 + $0x70] sm:$0xff]
    %v85 = vld [vmem:[#allocation5 + $0x78] sm:$0xff]
    %v86 = vld [vmem:[%s2] sm:$0x1]
    %v88 = vperm.slane %v86, 0
    %90 = vmatpush.msra.mxu0 %v85
    %91 = vmatpush.msra.mxu0 %v84
    %92 = vmatpush.msra.mxu0 %v83
    %93 = vmatpush.msra.mxu0 %v82
    %94 = vmatpush.msra.mxu0 %v81
    %95 = vmatpush.msra.mxu0 %v80
    %96 = vmatpush.msra.mxu0 %v79
    %97 = vmatpush.msra.mxu0 %v78
    %98 = vmatpush.msra.mxu0 %v77
    %99 = vmatpush.msra.mxu0 %v76
    %100 = vmatpush.msra.mxu0 %v75
    %101 = vmatpush.msra.mxu0 %v74
    %102 = vmatpush.msra.mxu0 %v73
    %103 = vmatpush.msra.mxu0 %v72
    %104 = vmatpush.msra.mxu0 %v71
    %105 = vmatpush.msra.mxu0 %v70
    %106 = vmatmul.f32.gmra.mxu0 %v68
    %v107 = vpop.f32.mrf.mxu0
    %v108 = vadd.f32 %v88, %v107
    %109 = vmatmul.f32.gmra.mxu0 %v69
    %v110 = vpop.f32.mrf.mxu0
    %v111 = vadd.f32 %v88, %v110
    %112 = vdwg.mxu0
    %v113 = vmax.f32 %v108, 0.0
    %v114 = vmax.f32 %v111, 0.0
    %v115 = vld [vmem:[#allocation7] sm:$0xff]
    %v116 = vld [vmem:[#allocation7 + $0x8] sm:$0xff]
    %v117 = vld [vmem:[#allocation7 + $0x10] sm:$0xff]
    %v118 = vld [vmem:[#allocation7 + $0x18] sm:$0xff]
    %v119 = vld [vmem:[#allocation7 + $0x20] sm:$0xff]
    %v120 = vld [vmem:[#allocation7 + $0x28] sm:$0xff]
    %v121 = vld [vmem:[#allocation7 + $0x30] sm:$0xff]
    %v122 = vld [vmem:[#allocation7 + $0x38] sm:$0xff]
    %v123 = vld [vmem:[#allocation7 + $0x40] sm:$0xff]
    %v124 = vld [vmem:[#allocation7 + $0x48] sm:$0xff]
    %v125 = vld [vmem:[#allocation7 + $0x50] sm:$0xff]
    %v126 = vld [vmem:[#allocation7 + $0x58] sm:$0xff]
    %v127 = vld [vmem:[#allocation7 + $0x60] sm:$0xff]
    %v128 = vld [vmem:[#allocation7 + $0x68] sm:$0xff]
    %v129 = vld [vmem:[#allocation7 + $0x70] sm:$0xff]
    %v130 = vld [vmem:[#allocation7 + $0x78] sm:$0xff]
    %v131 = vld [vmem:[%s4] sm:$0x1]
    %v133 = vperm.slane %v131, 0
    %135 = vmatpush.msra.mxu0 %v130
    %136 = vmatpush.msra.mxu0 %v129
    %137 = vmatpush.msra.mxu0 %v128
    %138 = vmatpush.msra.mxu0 %v127
    %139 = vmatpush.msra.mxu0 %v126
    %140 = vmatpush.msra.mxu0 %v125
    %141 = vmatpush.msra.mxu0 %v124
    %142 = vmatpush.msra.mxu0 %v123
    %143 = vmatpush.msra.mxu0 %v122
    %144 = vmatpush.msra.mxu0 %v121
    %145 = vmatpush.msra.mxu0 %v120
    %146 = vmatpush.msra.mxu0 %v119
    %147 = vmatpush.msra.mxu0 %v118
    %148 = vmatpush.msra.mxu0 %v117
    %149 = vmatpush.msra.mxu0 %v116
    %150 = vmatpush.msra.mxu0 %v115
    %151 = vmatmul.f32.gmra.mxu0 %v113
    %v152 = vpop.f32.mrf.mxu0
    %v153 = vadd.f32 %v133, %v152
    %154 = vmatmul.f32.gmra.mxu0 %v114
    %v155 = vpop.f32.mrf.mxu0
    %v156 = vadd.f32 %v133, %v155
    %157 = vdwg.mxu0
    %v158 = vmax.f32 %v153, 0.0
    %v159 = vmax.f32 %v156, 0.0
    %160 = vst [vmem:[#allocation8] sm:$0xff] %v158
    %161 = vst [vmem:[#allocation8 + $0x8] sm:$0xff] %v159
    // Predicated region
    $region34: #{tpu_custom_call.1} parent=1 // pred_check
      _
    $region35: #{tpu_custom_call.1} parent=1 // pred_check_branch
      %163 = sbr.rel (0) target = $region37
    $region36: #{tpu_custom_call.1} parent=1 // pred_region
      %165 = vsyncadd [#allocation4], 0
      %s166 = sshll.u32 [#allocation8], 4
      %s167 = int_to_ptr.vmem [resolvable:$true] %s166
      %s168 = sshll.u32 %s5, 4
      %s169 = int_to_ptr.hbm [resolvable:$true] %s168
      %174 = dma.vmem_to_hbm [thread:$0]  %s167, 256, %s169, [#allocation4], 128, 128, 8
    $region37: #{tpu_custom_call.1} parent=1 // pred_fallthru
      _
    // Predicated region
    $region38: #{tpu_custom_call.1} parent=1 // pred_check
      _
    $region39: #{tpu_custom_call.1} parent=1 // pred_check_branch
      %176 = sbr.rel (0) target = $region41
    $region40: #{tpu_custom_call.1} parent=1 // pred_region
      %178 = dma.done [#allocation4], 256
    $region41: #{tpu_custom_call.1} parent=1 // pred_fallthru
      _
    %179 = vsyncpa [#allocation3], 1
    %180 = vsyncpa [#allocation6], 1
    %181 = vsyncpa [#allocation4], 1

</llo_original>
